<compile_context>
chip_gen: v5e
topology: v5e:2x2
jax: 0.10.0
libtpu: 0.0.40
codegen_flags: <defaults>
</compile_context>

<pallas_src>
import functools

import jax
import jax.numpy as jnp
from jax import lax
from jax.experimental import pallas as pl
from jax.experimental.pallas import tpu as pltpu


def _round_up(x: int, m: int) -> int:
    return ((x + m - 1) // m) * m


def _cnn_kernel(x_ref, w_ref, b_ref, o_ref, *, l_out: int):
    """x_ref: (Bt, L_slice, KC_pad) bf16, w_ref: (KC_pad, F_pad) bf16,
    b_ref: (1, F_pad) f32, o_ref: (Bt, F_pad) f32."""
    bt, l_slice, kc_pad = x_ref.shape
    kc_pad_w, f_pad = w_ref.shape
    assert kc_pad_w == kc_pad
    assert l_slice % 8 == 0 and kc_pad % 128 == 0 and f_pad % 128 == 0
    assert 1 <= l_out <= l_slice

    # 8/128-aligned collapse: pure tile re-interpretation, no relayout.
    x2d = x_ref[...].reshape(bt * l_slice, kc_pad)

    # Single MXU matmul (bf16 x bf16 -> f32 accumulate).
    y = jnp.dot(x2d, w_ref[...], preferred_element_type=jnp.float32)
    y = y.reshape(bt, l_slice, f_pad)

    # Mask the zero-padded conv rows (t >= l_out) to -inf so they never win the max.
    row = lax.broadcasted_iota(jnp.int32, (bt, l_slice, f_pad), 1)
    y = jnp.where(row < l_out, y, -jnp.inf)

    # Global max-pool over conv positions; bias + ReLU commute with max.
    m = jnp.max(y, axis=1)                                   # (Bt, F_pad)
    o_ref[...] = jnp.maximum(m + b_ref[...], 0.0).astype(o_ref.dtype)


def _choose_b_tile(B: int, l_slice: int, kc_pad: int, f_pad: int,
                   vmem_budget_bytes: int = 8 << 20) -> int:
    """Pick a batch tile from the actual padded per-block bytes, 8-aligned."""
    if B <= 8:
        return B
    per_row = (2 * 2 * l_slice * kc_pad      # bf16 input block, double-buffered
               + 4 * l_slice * f_pad         # f32 matmul/mask temporary
               + 2 * 4 * f_pad)              # f32 output block, double-buffered
    bt = vmem_budget_bytes // max(per_row, 1)
    # >= 2 grid steps so v7x's two TensorCores split the batch and block i+1's
    # DMA overlaps block i's compute.
    bt = min(bt, -(-B // 2))
    bt = max(8, (bt // 8) * 8)
    return min(bt, B)


def cnn_forward(x, weight, bias, *, b_tile=None, compute_dtype=jnp.bfloat16):
    """x: (B, C, L) f32, weight: (F, C, K) f32, bias: (F,) f32 -> (B, F) f32."""
    B, C, L = x.shape
    F, C_w, K = weight.shape
    assert C_w == C, "weight channel dim must match input channels"
    assert bias.shape == (F,)
    assert L >= K, "max_word_length must be >= kernel_size"

    L_out = L - K + 1
    L_slice = _round_up(L_out, 8)            # sublane-aligned conv rows per word
    KC = K * C
    KC_pad = _round_up(KC, 128)              # lane-dense contraction dim
    F_pad = _round_up(F, 128)                # lane-dense output / MXU N dim

    # ---- wrapper-side layout plumbing (all cheap XLA ops) -------------------
    x_nwc = jnp.transpose(x, (0, 2, 1))                            # (B, L, C)
    cols = [x_nwc[:, j:j + L_out, :] for j in range(K)]            # K x (B, L_out, C)
    im2col = jnp.concatenate(cols, axis=-1)                        # (B, L_out, K*C)
    im2col = jnp.pad(im2col, ((0, 0), (0, L_slice - L_out), (0, KC_pad - KC)))
    im2col = im2col.astype(compute_dtype)                          # (B, L_slice, KC_pad)

    w2 = jnp.transpose(weight, (2, 1, 0)).reshape(KC, F)           # row j*C + c == W[f, c, j]
    w2 = jnp.pad(w2, ((0, KC_pad - KC), (0, F_pad - F))).astype(compute_dtype)
    b2 = jnp.pad(bias, (0, F_pad - F)).reshape(1, F_pad).astype(jnp.float32)

    if b_tile is None:
        b_tile = _choose_b_tile(B, L_slice, KC_pad, F_pad)
    grid = (pl.cdiv(B, b_tile),)

    itemsize = jnp.dtype(compute_dtype).itemsize
    cost = pl.CostEstimate(
        flops=2 * B * L_slice * F_pad * KC_pad,
        transcendentals=0,
        bytes_accessed=itemsize * (im2col.size + grid[0] * w2.size)
        + 4 * (grid[0] * b2.size + B * F_pad),
    )

    kernel = functools.partial(_cnn_kernel, l_out=L_out)
    out_padded = pl.pallas_call(
        kernel,
        out_shape=jax.ShapeDtypeStruct((B, F_pad), jnp.float32),
        grid=grid,
        in_specs=[
            pl.BlockSpec((b_tile, L_slice, KC_pad), lambda i: (i, 0, 0)),
            pl.BlockSpec((KC_pad, F_pad), lambda i: (0, 0)),
            pl.BlockSpec((1, F_pad), lambda i: (0, 0)),
        ],
        out_specs=pl.BlockSpec((b_tile, F_pad), lambda i: (i, 0)),
        compiler_params=pltpu.CompilerParams(dimension_semantics=("parallel",)),
        cost_estimate=cost,
    )(im2col, w2, b2)

    return out_padded[:, :F] if F_pad != F else out_padded


def cnn_reference(x, weight, bias):
    """Pure-JAX reference of the PyTorch forward (conv1d -> relu -> global maxpool)."""
    K = weight.shape[-1]
    L_out = x.shape[-1] - K + 1
    y = sum(
        jnp.einsum("bcl,fc->blf", x[:, :, j:j + L_out], weight[:, :, j])
        for j in range(K)
    )
    y = jnp.maximum(y + bias[None, None, :], 0.0)
    return jnp.max(y, axis=1)


if __name__ == "__main__":
    # Small shapes consistent with the module:
    # batch=2, char_embed_size=4, max_word_length=16, num_filters=32, kernel=5
    batch = 2
    char_embed_size = 4
    max_word_length = 16
    num_filters = 32
    kernel_size = 5

    key = jax.random.PRNGKey(0)
    kx, kw, kb = jax.random.split(key, 3)

    x = jax.random.normal(kx, (batch, char_embed_size, max_word_length), dtype=jnp.float32)

    # Deterministic parameter init (nn.Conv1d parameter shapes; uniform like PyTorch default).
    fan_in = char_embed_size * kernel_size
    bound = 1.0 / (fan_in ** 0.5)
    weight = jax.random.uniform(
        kw, (num_filters, char_embed_size, kernel_size),
        minval=-bound, maxval=bound, dtype=jnp.float32)
    bias = jax.random.uniform(
        kb, (num_filters,), minval=-bound, maxval=bound, dtype=jnp.float32)

    out = cnn_forward(x, weight, bias)
    out = jax.block_until_ready(out)

    # Reference on bf16-rounded inputs (kernel feeds bf16 to the MXU, f32 accumulate).
    x_q = x.astype(jnp.bfloat16).astype(jnp.float32)
    w_q = weight.astype(jnp.bfloat16).astype(jnp.float32)
    ref = cnn_reference(x_q, w_q, bias)

    assert out.shape == (batch, num_filters), out.shape
    assert jnp.allclose(out, ref, atol=1e-4, rtol=1e-4), "mismatch vs reference"

    print("KERNEL_OK")
</pallas_src>

<mosaic_0001>
module attributes {stable_mosaic.version = 11 : i64} {
  func.func @_cnn_kernel(%arg0: i32, %arg1: memref<2x16x128xbf16, #tpu.memory_space<vmem>>, %arg2: memref<128x128xbf16, #tpu.memory_space<vmem>>, %arg3: memref<1x128xf32, #tpu.memory_space<vmem>>, %arg4: memref<2x128xf32, #tpu.memory_space<vmem>>) attributes {dimension_semantics = [#tpu.dimension_semantics<parallel>], iteration_bounds = array<i64: 1>, scalar_prefetch = 0 : i64, scratch_operands = 0 : i64, tpu.core_type = #tpu.core_type<tc>, window_params = [{transform_indices = @transform_0, window_bounds = array<i64: 2, 16, 128>}, {pipeline_mode = #tpu.pipeline_mode<synchronous>, transform_indices = @transform_1, window_bounds = array<i64: 128, 128>}, {pipeline_mode = #tpu.pipeline_mode<synchronous>, transform_indices = @transform_2, window_bounds = array<i64: 1, 128>}, {transform_indices = @transform_3, window_bounds = array<i64: 2, 128>}]} {
    %c0 = arith.constant 0 : index
    %c0_0 = arith.constant 0 : index
    %c0_1 = arith.constant 0 : index
    %0 = vector.load %arg1[%c0, %c0_0, %c0_1] : memref<2x16x128xbf16, #tpu.memory_space<vmem>>, vector<2x16x128xbf16>
    %1 = vector.shape_cast %0 : vector<2x16x128xbf16> to vector<32x128xbf16>
    %c0_2 = arith.constant 0 : index
    %c0_3 = arith.constant 0 : index
    %2 = vector.load %arg2[%c0_2, %c0_3] : memref<128x128xbf16, #tpu.memory_space<vmem>>, vector<128x128xbf16>
    %cst = arith.constant dense<0.000000e+00> : vector<32x128xf32>
    %3 = tpu.matmul %1, %2, %cst {dimension_numbers = #tpu.dot_dimension_numbers<[1], [0], [0], [1], [0, 0, 1, 1], [], []>} : vector<32x128xbf16>, vector<128x128xbf16>, vector<32x128xf32> -> vector<32x128xf32>
    %4 = vector.shape_cast %3 : vector<32x128xf32> to vector<2x16x128xf32>
    %5 = tpu.iota {dimensions = array<i32: 1>} : vector<2x16x128xi32>
    %c12_i32 = arith.constant 12 : i32
    %6 = vector.broadcast %c12_i32 : i32 to vector<2x16x128xi32>
    %7 = arith.cmpi slt, %5, %6 : vector<2x16x128xi32>
    %cst_4 = arith.constant 0xFF800000 : f32
    %8 = vector.broadcast %cst_4 : f32 to vector<2x16x128xf32>
    %9 = arith.select %7, %4, %8 : vector<2x16x128xi1>, vector<2x16x128xf32>
    %cst_5 = arith.constant dense<0xFF800000> : vector<2x128xf32>
    %10 = vector.multi_reduction <maximumf>, %9, %cst_5 [1] : vector<2x16x128xf32> to vector<2x128xf32>
    %c0_6 = arith.constant 0 : index
    %c0_7 = arith.constant 0 : index
    %11 = vector.load %arg3[%c0_6, %c0_7] : memref<1x128xf32, #tpu.memory_space<vmem>>, vector<1x128xf32>
    %12 = vector.broadcast %11 : vector<1x128xf32> to vector<2x128xf32>
    %13 = arith.addf %10, %12 : vector<2x128xf32>
    %cst_8 = arith.constant 0.000000e+00 : f32
    %14 = vector.broadcast %cst_8 : f32 to vector<2x128xf32>
    %15 = arith.maximumf %13, %14 : vector<2x128xf32>
    %c0_9 = arith.constant 0 : index
    %c0_10 = arith.constant 0 : index
    %16 = vector.load %arg4[%c0_9, %c0_10] : memref<2x128xf32, #tpu.memory_space<vmem>>, vector<2x128xf32>
    tpu.vector_store %arg4[%c0_9, %c0_10], %15 {strides = array<i32>} : memref<2x128xf32, #tpu.memory_space<vmem>>, vector<2x128xf32>,
    return
  }
  func.func @transform_0(%arg0: i32) -> (i32, i32, i32) {
    %c0_i32 = arith.constant 0 : i32
    %c0_i32_0 = arith.constant 0 : i32
    %c0_i32_1 = arith.constant 0 : i32
    return %arg0, %c0_i32, %c0_i32_0 : i32, i32, i32
  }
  func.func @transform_1(%arg0: i32) -> (i32, i32) {
    %c0_i32 = arith.constant 0 : i32
    %c0_i32_0 = arith.constant 0 : i32
    %c0_i32_1 = arith.constant 0 : i32
    return %c0_i32, %c0_i32_0 : i32, i32
  }
  func.func @transform_2(%arg0: i32) -> (i32, i32) {
    %c0_i32 = arith.constant 0 : i32
    %c0_i32_0 = arith.constant 0 : i32
    %c0_i32_1 = arith.constant 0 : i32
    return %c0_i32, %c0_i32_0 : i32, i32
  }
  func.func @transform_3(%arg0: i32) -> (i32, i32) {
    %c0_i32 = arith.constant 0 : i32
    %c0_i32_0 = arith.constant 0 : i32
    return %arg0, %c0_i32 : i32, i32
  }
}

</mosaic_0001>

<llo_original>
// kernel: tpu_custom_call.1
$region0: #{tpu_custom_call.1}
  #allocation0 [shape = 'u32[]', space=smem, size = 0x4, offset = 0x4, fixed_abs, tag = 'smem constant byte address 0x4 - core index']
  #allocation1 [shape = 'u32[72,128]{1,0:T(1,128)}', space=vmem, size = 0x9000, scoped, tag = 'internal scratch']
  %s0 = inlined_call_operand.hbm [shape: bf16[2,16,128], index: 0, kind: input, shape index: {}]
  %s1 = inlined_call_operand.hbm [shape: bf16[128,128], index: 1, kind: input, shape index: {}]
  %s2 = inlined_call_operand.vmem [shape: f32[1,128], index: 2, kind: input, shape index: {}]
  %s3 = inlined_call_operand.hbm [shape: f32[2,128], index: 3, kind: output, shape index: {}]
  %s4 = sld [smem:[#allocation0]]
  $region30: #{tpu_custom_call.1} parent=0
    _
  %s6 = ssub.s32 1, %s4
  %s7 = scalar_select 0, %s6, %s4
  $region1: #{tpu_custom_call.1} parent=0
    #allocation2 [shape = 'u8[8192]{0}', space=vmem, size = 0x2000, scoped, tag = 'input window, operand 0, single buffered']
    #allocation3 [shape = 's32[1]{0}', space=sflag, size = 0x4, scoped, tag = 'scoped memory for tpu_custom_call.1']
    #allocation4 [shape = 's32[1]{0}', space=sflag, size = 0x4, scoped, tag = 'scoped memory for tpu_custom_call.1']
    #allocation5 [shape = 'u8[32768]{0}', space=vmem, size = 0x8000, scoped, tag = 'input window, operand 1, single buffered']
    #allocation6 [shape = 's32[1]{0}', space=sflag, size = 0x4, scoped, tag = 'scoped memory for tpu_custom_call.1']
    #allocation7 [shape = 'u8[1024]{0}', space=vmem, size = 0x400, scoped, tag = 'output window, operand 0, single buffered']
    %8 = vsyncpa [#allocation3], 0
    %9 = vsyncpa [#allocation6], 0
    %10 = vsyncpa [#allocation4], 0
    // Predicated region
    $region2: #{tpu_custom_call.1} parent=1 // pred_check
      _
    $region3: #{tpu_custom_call.1} parent=1 // pred_check_branch
      %12 = sbr.rel (0) target = $region5
    $region4: #{tpu_custom_call.1} parent=1 // pred_region
      %14 = vsyncadd [#allocation3], 0
      %s15 = sshll.u32 %s0, 4
      %s16 = int_to_ptr.hbm [resolvable:$true] %s15
      %s17 = sshll.u32 [#allocation2], 4
      %s18 = int_to_ptr.vmem [resolvable:$true] %s17
      %23 = dma.hbm_to_vmem [thread:$0]  %s16, 256, %s18, [#allocation3], 64, 64, 4
    $region5: #{tpu_custom_call.1} parent=1 // pred_fallthru
      _
    // Predicated region
    $region6: #{tpu_custom_call.1} parent=1 // pred_check
      _
    $region7: #{tpu_custom_call.1} parent=1 // pred_check_branch
      %25 = sbr.rel (0) target = $region9
    $region8: #{tpu_custom_call.1} parent=1 // pred_region
      %27 = vsyncadd [#allocation6], 0
      %s28 = sshll.u32 %s1, 4
      %s29 = int_to_ptr.hbm [resolvable:$true] %s28
      %s30 = sshll.u32 [#allocation5], 4
      %s31 = int_to_ptr.vmem [resolvable:$true] %s30
      %36 = dma.hbm_to_vmem [thread:$0]  %s29, 1024, %s31, [#allocation6], 64, 64, 4
    $region9: #{tpu_custom_call.1} parent=1 // pred_fallthru
      _
    // Predicated region
    $region10: #{tpu_custom_call.1} parent=1 // pred_check
      _
    $region11: #{tpu_custom_call.1} parent=1 // pred_check_branch
      %38 = sbr.rel (0) target = $region13
    $region12: #{tpu_custom_call.1} parent=1 // pred_region
      _
    $region13: #{tpu_custom_call.1} parent=1 // pred_fallthru
      _
    // Predicated region
    $region14: #{tpu_custom_call.1} parent=1 // pred_check
      _
    $region15: #{tpu_custom_call.1} parent=1 // pred_check_branch
      %40 = sbr.rel (0) target = $region17
    $region16: #{tpu_custom_call.1} parent=1 // pred_region
      %42 = dma.done [#allocation3], 256
    $region17: #{tpu_custom_call.1} parent=1 // pred_fallthru
      _
    // Predicated region
    $region18: #{tpu_custom_call.1} parent=1 // pred_check
      _
    $region19: #{tpu_custom_call.1} parent=1 // pred_check_branch
      %44 = sbr.rel (0) target = $region21
    $region20: #{tpu_custom_call.1} parent=1 // pred_region
      %46 = dma.done [#allocation6], 1024
    $region21: #{tpu_custom_call.1} parent=1 // pred_fallthru
      _
    %v47 = vld [vmem:[#allocation2] sm:$0xf]
    %v48 = vld [vmem:[#allocation2 + $0x4] sm:$0xf]
    %v49 = vld [vmem:[#allocation2 + $0x8] sm:$0xf]
    %v50 = vld [vmem:[#allocation2 + $0xc] sm:$0xf]
    %v51 = vld [vmem:[#allocation5] sm:$0xf]
    %v52 = vld [vmem:[#allocation5 + $0x4] sm:$0xf]
    %v53 = vld [vmem:[#allocation5 + $0x8] sm:$0xf]
    %v54 = vld [vmem:[#allocation5 + $0xc] sm:$0xf]
    %v55 = vld [vmem:[#allocation5 + $0x10] sm:$0xf]
    %v56 = vld [vmem:[#allocation5 + $0x14] sm:$0xf]
    %v57 = vld [vmem:[#allocation5 + $0x18] sm:$0xf]
    %v58 = vld [vmem:[#allocation5 + $0x1c] sm:$0xf]
    %v59 = vld [vmem:[#allocation5 + $0x20] sm:$0xf]
    %v60 = vld [vmem:[#allocation5 + $0x24] sm:$0xf]
    %v61 = vld [vmem:[#allocation5 + $0x28] sm:$0xf]
    %v62 = vld [vmem:[#allocation5 + $0x2c] sm:$0xf]
    %v63 = vld [vmem:[#allocation5 + $0x30] sm:$0xf]
    %v64 = vld [vmem:[#allocation5 + $0x34] sm:$0xf]
    %v65 = vld [vmem:[#allocation5 + $0x38] sm:$0xf]
    %v66 = vld [vmem:[#allocation5 + $0x3c] sm:$0xf]
    %v71 = vunpack.c.l.b16 %v47
    %v72 = vunpack.c.l.b16 %v48
    %v73 = vunpack.c.l.b16 %v49
    %v74 = vunpack.c.l.b16 %v50
    %v75 = vpack.c.b16 %v72, %v71
    %v76 = vpack.c.b16 %v74, %v73
    %v95 = vunpack.c.l.b16 %v51
    %v96 = vunpack.c.l.b16 %v52
    %v97 = vunpack.c.l.b16 %v53
    %v98 = vunpack.c.l.b16 %v54
    %v99 = vunpack.c.l.b16 %v55
    %v100 = vunpack.c.l.b16 %v56
    %v101 = vunpack.c.l.b16 %v57
    %v102 = vunpack.c.l.b16 %v58
    %v103 = vunpack.c.l.b16 %v59
    %v104 = vunpack.c.l.b16 %v60
    %v105 = vunpack.c.l.b16 %v61
    %v106 = vunpack.c.l.b16 %v62
    %v107 = vunpack.c.l.b16 %v63
    %v108 = vunpack.c.l.b16 %v64
    %v109 = vunpack.c.l.b16 %v65
    %v110 = vunpack.c.l.b16 %v66
    %v111 = vpack.c.b16 %v96, %v95
    %v112 = vpack.c.b16 %v98, %v97
    %v113 = vpack.c.b16 %v100, %v99
    %v114 = vpack.c.b16 %v102, %v101
    %v115 = vpack.c.b16 %v104, %v103
    %v116 = vpack.c.b16 %v106, %v105
    %v117 = vpack.c.b16 %v108, %v107
    %v118 = vpack.c.b16 %v110, %v109
    %127 = vmatpush.bf16.msra.mxu0 %v118
    %128 = vmatpush.bf16.msra.mxu0 %v117
    %129 = vmatpush.bf16.msra.mxu0 %v116
    %130 = vmatpush.bf16.msra.mxu0 %v115
    %131 = vmatpush.bf16.msra.mxu0 %v114
    %132 = vmatpush.bf16.msra.mxu0 %v113
    %133 = vmatpush.bf16.msra.mxu0 %v112
    %134 = vmatpush.bf16.msra.mxu0 %v111
    %135 = vmatmul.bf16.gmra.mxu0 %v75
    %v136 = vpop.f32.mrf.mxu0
    %v137 = vadd.f32 0.0, %v136
    %v138 = vpop.f32.mrf.mxu0
    %v139 = vadd.f32 0.0, %v138
    %140 = vmatmul.bf16.gmra.mxu0 %v76
    %v141 = vpop.f32.mrf.mxu0
    %v142 = vadd.f32 0.0, %v141
    %v143 = vpop.f32.mrf.mxu0
    %v144 = vadd.f32 0.0, %v143
    %145 = vdwg.mxu0
    %v146 = vlaneseq
    %v147 = vshrl.u32 %v146, 7
    %v148 = vadd.s32 %v147, 8
    %vm149 = vcmp.lt.s32.totalorder %v147, 12
    %vm150 = vcmp.lt.s32.totalorder %v148, 12
    %v151 = vsel %vm149, %v137, -inf
    %v152 = vsel %vm150, %v139, -inf
    %v153 = vsel %vm149, %v142, -inf
    %v154 = vsel %vm150, %v144, -inf
    %v155 = vmax.f32 %v151, %v152
    %v156 = vrot.slane %v155, 4
    %v157 = vmax.f32 %v155, %v156
    %v158 = vrot.slane %v157, 2
    %v159 = vmax.f32 %v157, %v158
    %v160 = vrot.slane %v159, 1
    %v161 = vmax.f32 %v159, %v160
    %v162 = vmax.f32 %v153, %v154
    %v163 = vrot.slane %v162, 4
    %v164 = vmax.f32 %v162, %v163
    %v165 = vrot.slane %v164, 2
    %v166 = vmax.f32 %v164, %v165
    %v167 = vrot.slane %v166, 1
    %v168 = vmax.f32 %v166, %v167
    %v169 = vld [vmem:[%s2] sm:$0x1]
    %v171 = vperm.slane %v169, 0
    %v173 = vadd.f32 %v161, %v171
    %v174 = vadd.f32 %v168, %v171
    %v175 = vmax.f32 %v173, 0.0
    %v176 = vmax.f32 %v174, 0.0
    %v179 = vrot.slane %v176, 7
    %vm180 = vcmask 1041409
    %v181 = vsel %vm180, %v179, %v175
    %183 = vst [vmem:[#allocation7] sm:$0x3] %v181
    // Predicated region
    $region22: #{tpu_custom_call.1} parent=1 // pred_check
      _
    $region23: #{tpu_custom_call.1} parent=1 // pred_check_branch
      %185 = sbr.rel (0) target = $region25
    $region24: #{tpu_custom_call.1} parent=1 // pred_region
      %187 = vsyncadd [#allocation4], 0
      %s189 = sshll.u32 [#allocation7], 4
      %s190 = int_to_ptr.vmem [resolvable:$true] %s189
      %s191 = sshll.u32 %s3, 4
      %s192 = int_to_ptr.hbm [resolvable:$true] %s191
      %194 = dma.vmem_to_hbm [thread:$0]  %s190, 32, %s192, [#allocation4]
    $region25: #{tpu_custom_call.1} parent=1 // pred_fallthru
      _
    // Predicated region
    $region26: #{tpu_custom_call.1} parent=1 // pred_check
      _
    $region27: #{tpu_custom_call.1} parent=1 // pred_check_branch
      %196 = sbr.rel (0) target = $region29
    $region28: #{tpu_custom_call.1} parent=1 // pred_region
      %198 = dma.done [#allocation4], 32
    $region29: #{tpu_custom_call.1} parent=1 // pred_fallthru
      _
    %199 = vsyncpa [#allocation3], 1
    %200 = vsyncpa [#allocation6], 1
    %201 = vsyncpa [#allocation4], 1

</llo_original>
